<compile_context>
chip_gen: v5e
topology: v5e:2x2
jax: 0.10.0
libtpu: 0.0.40
codegen_flags: <defaults>
</compile_context>

<pallas_src>
import jax
import jax.numpy as jnp
import numpy as np
from jax.experimental import pallas as pl
from jax.experimental.pallas import tpu as pltpu

EPS = 1e-8


def _round_up(x, m):
    return ((x + m - 1) // m) * m


# ----------------------------- Pallas kernel --------------------------------

def _encoder_image_kernel(images_ref, sinfo_ref, count_ref,
                          w1i_ref, w1s_ref, b1_ref,
                          wg2_ref, bg2_ref, wn2_ref, bn2_ref,
                          wm1_ref, bm1_ref, wm2_ref, bm2_ref,
                          out_ref):
    """One grid step processes tb batch elements flattened to M = tb*k rows."""
    img = images_ref[...]                       # (M, D) bf16
    sif = sinfo_ref[...]                        # (M, 5) bf16 (0.1 scale folded into w1s)
    cnt = count_ref[...]                        # (M, M) bf16 block-diagonal count matrix
    d = images_ref.shape[-1]

    # Fused first layers of gate_fn and node_fn:
    #   h = relu([images | 0.1*s_infos] @ [Wg1 ; Wn1] + [bg1 ; bn1])
    # D-row and 5-row weight blocks kept separate so `images` bytes are DMA'd
    # once (no x_cat concat input).  bf16 operands, f32 accumulation.
    h = (jnp.dot(img, w1i_ref[...], preferred_element_type=jnp.float32)
         + jnp.dot(sif, w1s_ref[...], preferred_element_type=jnp.float32)
         + b1_ref[...])
    h = jnp.maximum(h, 0.0)                     # (M, 2D) f32
    hg = h[:, :d]                               # gate branch
    hn = h[:, d:]                               # node branch

    # gate_fn second layer has N=1: degenerate on the MXU, so do it on the
    # VPU/XLU as a broadcast multiply + lane-sum reduction instead.
    gate = jnp.sum(hg * wg2_ref[...], axis=-1, keepdims=True) + bg2_ref[...]
    gate_m = jax.nn.sigmoid(gate)               # (M, 1) f32

    # node_fn second layer.
    v = jnp.dot(hn.astype(jnp.bfloat16), wn2_ref[...],
                preferred_element_type=jnp.float32) + bn2_ref[...]
    mv = (gate_m * v).astype(jnp.bfloat16)      # (M, D)

    # top-k gather + weighted sum expressed as ONE block-diagonal count matmul:
    #   rel[b, i, :] = sum_j m[b, e[b,i,j]] * v[b, e[b,i,j], :]
    #               = sum_n count[b, i, n] * (m*v)[b, n, :]
    # (no in-kernel reshapes -> no VMEM relayout copies)
    rel = jnp.dot(cnt, mv, preferred_element_type=jnp.float32)      # (M, D) f32

    # l2norm via a single rsqrt; eps**2 inside keeps x == 0 -> 0 and differs
    # from the reference x / (sqrt(sum) + eps) by ~1e-8 relative otherwise.
    rel = rel * jax.lax.rsqrt(
        jnp.sum(rel * rel, axis=-1, keepdims=True) + EPS * EPS)

    # residual + `map` MLP + final l2norm.  wm2/bm2 are zero-padded to E_pad
    # lanes so the output store is lane-dense (unmasked vst); padded lanes are
    # exactly zero and do not perturb the norm.
    xin = (img.astype(jnp.float32) + rel).astype(jnp.bfloat16)
    hm = jnp.maximum(
        jnp.dot(xin, wm1_ref[...], preferred_element_type=jnp.float32)
        + bm1_ref[...], 0.0)
    emb = jnp.dot(hm.astype(jnp.bfloat16), wm2_ref[...],
                  preferred_element_type=jnp.float32) + bm2_ref[...]
    emb = emb * jax.lax.rsqrt(
        jnp.sum(emb * emb, axis=-1, keepdims=True) + EPS * EPS)
    out_ref[...] = emb.astype(out_ref.dtype)    # (M, E_pad)


# ----------------------------- glue (plain JAX) -------------------------------

def _prep_gather_inputs(bboxes, img_range, n_partial):
    """s_infos construction, top-k, per-batch count matrix.

    # TODO(synk): the top-k / effe_ids construction is data-dependent index
    # glue with no clean Pallas equivalent; it is done in plain JAX and fed to
    # the kernel as a dense count matrix (count @ (m*v) == gather-sum).
    """
    B, k = bboxes.shape[:2]
    area = (bboxes[:, :, 2] - bboxes[:, :, 0]) * (bboxes[:, :, 3] - bboxes[:, :, 1])
    s_infos = jnp.concatenate([bboxes, area[:, :, None]], axis=2)          # (B, k, 5)

    effe_rels, topk_idx = jax.lax.top_k(img_range, n_partial)              # (B, k, 5)
    idx_background = jnp.broadcast_to(jnp.arange(k)[None, :, None], (B, k, n_partial))
    effe_ids = jnp.where(effe_rels == 1, topk_idx, idx_background)         # (B, k, 5)
    # count[b, i, n] = #{j : effe_ids[b, i, j] == n}
    count = jnp.sum(jax.nn.one_hot(effe_ids, k, dtype=jnp.float32), axis=2)  # (B, k, k)
    return s_infos, count, effe_ids


def _pick_tb(B, k, target_rows):
    """Pick tb (batches per grid step) such that B % tb == 0 and rows = tb*k is
    sublane-aligned; prefer >= 2 grid steps (both v7x TCs), then 128/16-aligned
    rows, then the largest tb within the target row budget."""
    cap = max(1, min(B, target_rows // max(k, 1)))
    cands = []
    for tb in range(cap, 0, -1):
        if B % tb:
            continue
        rows = tb * k
        if rows % 8 and tb != B:     # tb == B -> single full-array block is always legal
            continue
        cands.append(tb)
    if not cands:
        return B
    def score(tb):
        rows = tb * k
        return ((B // tb) >= 2, rows % 128 == 0, rows % 16 == 0, tb)
    return max(cands, key=score)


# ----------------------------- wrapper ---------------------------------------

def pack_params(params, img_dim, embed_size):
    """Repack torch-style weights for the kernel:
    - wg1/wn1 split into D-row and 5-row blocks, concatenated to (D,2D)/(5,2D)
    - the 0.1 s_infos scale folded into the 5-row block
    - wg2 transposed to a (1, D) row for the VPU gate reduction (kept f32)
    - wm2/bm2 zero-padded to a multiple of 128 output lanes (lane-dense store)
    - all MXU weights cast to bf16 (f32 accumulation in-kernel); biases stay f32
    """
    D, E = img_dim, embed_size
    e_pad = max(_round_up(E, 128), 128)
    wdt = jnp.bfloat16
    w1i = jnp.concatenate([params["wg1"][:D], params["wn1"][:D]], axis=1).astype(wdt)
    w1s = (0.1 * jnp.concatenate([params["wg1"][D:], params["wn1"][D:]], axis=1)).astype(wdt)
    b1 = jnp.concatenate([params["bg1"], params["bn1"]], axis=1)            # (1, 2D) f32
    wg2 = params["wg2"].T                                                   # (1, D) f32
    wm2 = jnp.pad(params["wm2"], ((0, 0), (0, e_pad - E))).astype(wdt)      # (D, E_pad)
    bm2 = jnp.pad(params["bm2"], ((0, 0), (0, e_pad - E)))                  # (1, E_pad)
    return dict(w1i=w1i, w1s=w1s, b1=b1,
                wg2=wg2, bg2=params["bg2"],
                wn2=params["wn2"].astype(wdt), bn2=params["bn2"],
                wm1=params["wm1"].astype(wdt), bm1=params["bm1"],
                wm2=wm2, bm2=bm2)


def encoder_image_forward(images, bboxes, img_range, packed, embed_size,
                          n_partial=5, target_rows=512):
    # target_rows=512 is a v7x-safe default (64 MiB VMEM with ~36 MiB of
    # resident bf16 weights at real SCAN dims); raise to 1024 on v5e/v6e.
    B, k, D = images.shape
    e_pad = packed["wm2"].shape[1]

    s_infos, count, _ = _prep_gather_inputs(bboxes, img_range, n_partial)
    images_flat = images.reshape(B * k, D).astype(jnp.bfloat16)
    sinfo_flat = s_infos.reshape(B * k, 5).astype(jnp.bfloat16)

    tb = _pick_tb(B, k, target_rows)
    grid = (B // tb,)
    rows = tb * k
    G = B // tb

    # Block-diagonal per-step count matrix: the per-batch gather-sum becomes a
    # single lane/sublane-aligned (rows, rows) @ (rows, D) matmul in-kernel.
    count_g = count.reshape(G, tb, k, k)
    eye_tb = jnp.eye(tb, dtype=count.dtype)
    count_bd = count_g[:, :, :, None, :] * eye_tb[None, :, None, :, None]   # (G,tb,k,tb,k)
    count_flat = count_bd.reshape(B * k, rows).astype(jnp.bfloat16)         # (B*k, rows)

    weight_names = ["w1i", "w1s", "b1", "wg2", "bg2",
                    "wn2", "bn2", "wm1", "bm1", "wm2", "bm2"]
    weights = [packed[n] for n in weight_names]

    def resident_spec(arr):
        nd = arr.ndim
        # grid-invariant weights: full-shape block, single-buffered (no point
        # double-buffering a constant block -> halves weight VMEM footprint).
        return pl.BlockSpec(arr.shape, lambda b, _nd=nd: (0,) * _nd,
                            pipeline_mode=pl.Buffered(1))

    in_specs = [
        pl.BlockSpec((rows, D), lambda b: (b, 0)),        # images (flattened rows)
        pl.BlockSpec((rows, 5), lambda b: (b, 0)),        # s_infos
        pl.BlockSpec((rows, rows), lambda b: (b, 0)),     # block-diag count matrix
    ] + [resident_spec(w) for w in weights]

    out_flat = pl.pallas_call(
        _encoder_image_kernel,
        # TODO(synk): emit bf16 output here if downstream tolerates it
        # (l2norm is already done in f32 before the store).
        out_shape=jax.ShapeDtypeStruct((B * k, e_pad), jnp.float32),
        grid=grid,
        in_specs=in_specs,
        out_specs=pl.BlockSpec((rows, e_pad), lambda b: (b, 0)),
        compiler_params=pltpu.CompilerParams(
            dimension_semantics=("parallel",),
            # below v7x's 64 MiB physical VMEM so internal scratch / activation
            # double-buffers still fit; plenty of headroom on v5e/v6e (128 MiB).
            vmem_limit_bytes=56 * 1024 * 1024),
    )(images_flat, sinfo_flat, count_flat, *weights)

    return out_flat.reshape(B, k, e_pad)[:, :, :embed_size]


# ----------------------------- reference (pure JAX) ---------------------------

def encoder_image_reference(images, bboxes, img_range, params, n_partial=5):
    """Mirrors the PyTorch forward (gather-based) for validation."""
    B, k, D = images.shape
    s_infos, _, effe_ids = _prep_gather_inputs(bboxes, img_range, n_partial)
    x_cat = jnp.concatenate([images, s_infos * 0.1], axis=2)

    def l2norm(x):
        return x / (jnp.sqrt(jnp.sum(x * x, axis=-1, keepdims=True)) + EPS)

    hg = jax.nn.relu(x_cat @ params["wg1"] + params["bg1"])
    gate = hg @ params["wg2"] + params["bg2"]
    m = jax.nn.sigmoid(gate)                                    # (B, k, 1)

    hn = jax.nn.relu(x_cat @ params["wn1"] + params["bn1"])
    v = hn @ params["wn2"] + params["bn2"]                      # (B, k, D)

    b_idx = jnp.arange(B)[:, None, None]
    m_g = m[b_idx, effe_ids, 0]                                 # (B, k, 5)
    v_g = v[b_idx, effe_ids, :]                                 # (B, k, 5, D)
    out = jnp.einsum("bkj,bkjd->bkd", m_g, v_g)                 # (B, k, D)
    out = l2norm(out)

    xin = images + out
    hm = jax.nn.relu(xin @ params["wm1"] + params["bm1"])
    emb = hm @ params["wm2"] + params["bm2"]
    return l2norm(emb)


# ----------------------------- parameter init --------------------------------

def init_params(key, img_dim, embed_size):
    """Deterministic Xavier-uniform init. Weights stored as (in, out) = torch W.T;
    biases stored as (1, out)."""
    def linear(k, fan_in, fan_out):
        r = np.sqrt(6.0) / np.sqrt(fan_in + fan_out)
        w = jax.random.uniform(k, (fan_in, fan_out), jnp.float32, -r, r)
        b = jnp.zeros((1, fan_out), jnp.float32)
        return w, b

    keys = jax.random.split(key, 6)
    wg1, bg1 = linear(keys[0], img_dim + 5, img_dim)
    wg2, bg2 = linear(keys[1], img_dim, 1)
    wn1, bn1 = linear(keys[2], img_dim + 5, img_dim)
    wn2, bn2 = linear(keys[3], img_dim, img_dim)
    wm1, bm1 = linear(keys[4], img_dim, img_dim)
    wm2, bm2 = linear(keys[5], img_dim, embed_size)
    # NOTE: self.fc / self.project exist in the module but are unused in forward.
    return dict(wg1=wg1, bg1=bg1, wg2=wg2, bg2=bg2,
                wn1=wn1, bn1=bn1, wn2=wn2, bn2=bn2,
                wm1=wm1, bm1=bm1, wm2=wm2, bm2=bm2)


# ----------------------------- main -------------------------------------------

if __name__ == "__main__":
    B, K, D, E = 4, 8, 32, 16          # (batch, regions, img_dim, embed_size)
    key = jax.random.PRNGKey(0)
    k_img, k_box, k_rng, k_par = jax.random.split(key, 4)

    images = jax.random.normal(k_img, (B, K, D), jnp.float32)
    bboxes = jax.random.uniform(k_box, (B, K, 4), jnp.float32)
    img_range = jax.random.bernoulli(k_rng, 0.5, (B, K, K)).astype(jnp.float32)
    params = init_params(k_par, D, E)
    packed = pack_params(params, D, E)

    emb = encoder_image_forward(images, bboxes, img_range, packed, E)
    emb = jax.block_until_ready(emb)

    ref = encoder_image_reference(images, bboxes, img_range, params)
    assert emb.shape == (B, K, E)
    # kernel runs bf16 operands / f32 accumulation end-to-end (the f32 reference
    # matmuls also lower to bf16 MXU passes at default precision) -> 1e-2 tol.
    assert jnp.allclose(emb, ref, rtol=1e-2, atol=1e-2), "kernel/ref mismatch"

    print("KERNEL_OK")
</pallas_src>

<mosaic_0001>
module attributes {stable_mosaic.version = 11 : i64} {
  func.func @_encoder_image_kernel(%arg0: i32, %arg1: memref<16x32xbf16, #tpu.memory_space<vmem>>, %arg2: memref<16x5xbf16, #tpu.memory_space<vmem>>, %arg3: memref<16x16xbf16, #tpu.memory_space<vmem>>, %arg4: memref<32x64xbf16, #tpu.memory_space<vmem>>, %arg5: memref<5x64xbf16, #tpu.memory_space<vmem>>, %arg6: memref<1x64xf32, #tpu.memory_space<vmem>>, %arg7: memref<1x32xf32, #tpu.memory_space<vmem>>, %arg8: memref<1x1xf32, #tpu.memory_space<vmem>>, %arg9: memref<32x32xbf16, #tpu.memory_space<vmem>>, %arg10: memref<1x32xf32, #tpu.memory_space<vmem>>, %arg11: memref<32x32xbf16, #tpu.memory_space<vmem>>, %arg12: memref<1x32xf32, #tpu.memory_space<vmem>>, %arg13: memref<32x128xbf16, #tpu.memory_space<vmem>>, %arg14: memref<1x128xf32, #tpu.memory_space<vmem>>, %arg15: memref<16x128xf32, #tpu.memory_space<vmem>>) attributes {dimension_semantics = [#tpu.dimension_semantics<parallel>], iteration_bounds = array<i64: 2>, scalar_prefetch = 0 : i64, scratch_operands = 0 : i64, tpu.core_type = #tpu.core_type<tc>, window_params = [{transform_indices = @transform_0, window_bounds = array<i64: 16, 32>}, {transform_indices = @transform_1, window_bounds = array<i64: 16, 5>}, {transform_indices = @transform_2, window_bounds = array<i64: 16, 16>}, {pipeline_mode = #tpu.pipeline_mode<synchronous>, transform_indices = @transform_3, window_bounds = array<i64: 32, 64>}, {pipeline_mode = #tpu.pipeline_mode<synchronous>, transform_indices = @transform_4, window_bounds = array<i64: 5, 64>}, {pipeline_mode = #tpu.pipeline_mode<synchronous>, transform_indices = @transform_5, window_bounds = array<i64: 1, 64>}, {pipeline_mode = #tpu.pipeline_mode<synchronous>, transform_indices = @transform_6, window_bounds = array<i64: 1, 32>}, {pipeline_mode = #tpu.pipeline_mode<synchronous>, transform_indices = @transform_7, window_bounds = array<i64: 1, 1>}, {pipeline_mode = #tpu.pipeline_mode<synchronous>, transform_indices = @transform_8, window_bounds = array<i64: 32, 32>}, {pipeline_mode = #tpu.pipeline_mode<synchronous>, transform_indices = @transform_9, window_bounds = array<i64: 1, 32>}, {pipeline_mode = #tpu.pipeline_mode<synchronous>, transform_indices = @transform_10, window_bounds = array<i64: 32, 32>}, {pipeline_mode = #tpu.pipeline_mode<synchronous>, transform_indices = @transform_11, window_bounds = array<i64: 1, 32>}, {pipeline_mode = #tpu.pipeline_mode<synchronous>, transform_indices = @transform_12, window_bounds = array<i64: 32, 128>}, {pipeline_mode = #tpu.pipeline_mode<synchronous>, transform_indices = @transform_13, window_bounds = array<i64: 1, 128>}, {transform_indices = @transform_14, window_bounds = array<i64: 16, 128>}]} {
    %c0 = arith.constant 0 : index
    %c0_0 = arith.constant 0 : index
    %0 = vector.load %arg1[%c0, %c0_0] : memref<16x32xbf16, #tpu.memory_space<vmem>>, vector<16x32xbf16>
    %c0_1 = arith.constant 0 : index
    %c0_2 = arith.constant 0 : index
    %1 = vector.load %arg2[%c0_1, %c0_2] : memref<16x5xbf16, #tpu.memory_space<vmem>>, vector<16x5xbf16>
    %c0_3 = arith.constant 0 : index
    %c0_4 = arith.constant 0 : index
    %2 = vector.load %arg3[%c0_3, %c0_4] : memref<16x16xbf16, #tpu.memory_space<vmem>>, vector<16x16xbf16>
    %c0_5 = arith.constant 0 : index
    %c0_6 = arith.constant 0 : index
    %3 = vector.load %arg4[%c0_5, %c0_6] : memref<32x64xbf16, #tpu.memory_space<vmem>>, vector<32x64xbf16>
    %cst = arith.constant dense<0.000000e+00> : vector<16x64xf32>
    %4 = tpu.matmul %0, %3, %cst {dimension_numbers = #tpu.dot_dimension_numbers<[1], [0], [0], [1], [0, 0, 1, 1], [], []>} : vector<16x32xbf16>, vector<32x64xbf16>, vector<16x64xf32> -> vector<16x64xf32>
    %c0_7 = arith.constant 0 : index
    %c0_8 = arith.constant 0 : index
    %5 = vector.load %arg5[%c0_7, %c0_8] : memref<5x64xbf16, #tpu.memory_space<vmem>>, vector<5x64xbf16>
    %cst_9 = arith.constant dense<0.000000e+00> : vector<16x64xf32>
    %6 = tpu.matmul %1, %5, %cst_9 {dimension_numbers = #tpu.dot_dimension_numbers<[1], [0], [0], [1], [0, 0, 1, 1], [], []>} : vector<16x5xbf16>, vector<5x64xbf16>, vector<16x64xf32> -> vector<16x64xf32>
    %7 = arith.addf %4, %6 : vector<16x64xf32>
    %c0_10 = arith.constant 0 : index
    %c0_11 = arith.constant 0 : index
    %8 = vector.load %arg6[%c0_10, %c0_11] : memref<1x64xf32, #tpu.memory_space<vmem>>, vector<1x64xf32>
    %9 = vector.broadcast %8 : vector<1x64xf32> to vector<16x64xf32>
    %10 = arith.addf %7, %9 : vector<16x64xf32>
    %cst_12 = arith.constant 0.000000e+00 : f32
    %11 = vector.broadcast %cst_12 : f32 to vector<16x64xf32>
    %12 = arith.maximumf %10, %11 : vector<16x64xf32>
    %13 = vector.extract_strided_slice %12 {offsets = [0, 0], sizes = [16, 32], strides = [1, 1]} : vector<16x64xf32> to vector<16x32xf32>
    %14 = vector.extract_strided_slice %12 {offsets = [0, 32], sizes = [16, 32], strides = [1, 1]} : vector<16x64xf32> to vector<16x32xf32>
    %c0_13 = arith.constant 0 : index
    %c0_14 = arith.constant 0 : index
    %15 = vector.load %arg7[%c0_13, %c0_14] : memref<1x32xf32, #tpu.memory_space<vmem>>, vector<1x32xf32>
    %16 = vector.broadcast %15 : vector<1x32xf32> to vector<16x32xf32>
    %17 = arith.mulf %13, %16 : vector<16x32xf32>
    %cst_15 = arith.constant dense<0.000000e+00> : vector<16xf32>
    %18 = vector.multi_reduction <add>, %17, %cst_15 [1] : vector<16x32xf32> to vector<16xf32>
    %19 = vector.shape_cast %18 : vector<16xf32> to vector<16x1xf32>
    %c0_16 = arith.constant 0 : index
    %c0_17 = arith.constant 0 : index
    %20 = vector.load %arg8[%c0_16, %c0_17] : memref<1x1xf32, #tpu.memory_space<vmem>>, vector<1x1xf32>
    %21 = vector.broadcast %20 : vector<1x1xf32> to vector<16x1xf32>
    %22 = arith.addf %19, %21 : vector<16x1xf32>
    %23 = arith.negf %22 : vector<16x1xf32>
    %24 = math.exp %23 : vector<16x1xf32>
    %cst_18 = arith.constant 1.000000e+00 : f32
    %25 = vector.broadcast %cst_18 : f32 to vector<16x1xf32>
    %26 = arith.addf %25, %24 : vector<16x1xf32>
    %27 = arith.divf %25, %26 : vector<16x1xf32>
    %28 = arith.truncf %14 : vector<16x32xf32> to vector<16x32xbf16>
    %c0_19 = arith.constant 0 : index
    %c0_20 = arith.constant 0 : index
    %29 = vector.load %arg9[%c0_19, %c0_20] : memref<32x32xbf16, #tpu.memory_space<vmem>>, vector<32x32xbf16>
    %cst_21 = arith.constant dense<0.000000e+00> : vector<16x32xf32>
    %30 = tpu.matmul %28, %29, %cst_21 {dimension_numbers = #tpu.dot_dimension_numbers<[1], [0], [0], [1], [0, 0, 1, 1], [], []>} : vector<16x32xbf16>, vector<32x32xbf16>, vector<16x32xf32> -> vector<16x32xf32>
    %c0_22 = arith.constant 0 : index
    %c0_23 = arith.constant 0 : index
    %31 = vector.load %arg10[%c0_22, %c0_23] : memref<1x32xf32, #tpu.memory_space<vmem>>, vector<1x32xf32>
    %32 = vector.broadcast %31 : vector<1x32xf32> to vector<16x32xf32>
    %33 = arith.addf %30, %32 : vector<16x32xf32>
    %34 = vector.broadcast %27 : vector<16x1xf32> to vector<16x32xf32>
    %35 = arith.mulf %34, %33 : vector<16x32xf32>
    %36 = arith.truncf %35 : vector<16x32xf32> to vector<16x32xbf16>
    %cst_24 = arith.constant dense<0.000000e+00> : vector<16x32xf32>
    %37 = tpu.matmul %2, %36, %cst_24 {dimension_numbers = #tpu.dot_dimension_numbers<[1], [0], [0], [1], [0, 0, 1, 1], [], []>} : vector<16x16xbf16>, vector<16x32xbf16>, vector<16x32xf32> -> vector<16x32xf32>
    %38 = arith.mulf %37, %37 : vector<16x32xf32>
    %cst_25 = arith.constant dense<0.000000e+00> : vector<16xf32>
    %39 = vector.multi_reduction <add>, %38, %cst_25 [1] : vector<16x32xf32> to vector<16xf32>
    %40 = vector.shape_cast %39 : vector<16xf32> to vector<16x1xf32>
    %cst_26 = arith.constant 1.000000e-16 : f32
    %41 = vector.broadcast %cst_26 : f32 to vector<16x1xf32>
    %42 = arith.addf %40, %41 : vector<16x1xf32>
    %43 = math.rsqrt %42 : vector<16x1xf32>
    %44 = vector.broadcast %43 : vector<16x1xf32> to vector<16x32xf32>
    %45 = arith.mulf %37, %44 : vector<16x32xf32>
    %46 = arith.extf %0 : vector<16x32xbf16> to vector<16x32xf32>
    %47 = arith.addf %46, %45 : vector<16x32xf32>
    %48 = arith.truncf %47 : vector<16x32xf32> to vector<16x32xbf16>
    %c0_27 = arith.constant 0 : index
    %c0_28 = arith.constant 0 : index
    %49 = vector.load %arg11[%c0_27, %c0_28] : memref<32x32xbf16, #tpu.memory_space<vmem>>, vector<32x32xbf16>
    %cst_29 = arith.constant dense<0.000000e+00> : vector<16x32xf32>
    %50 = tpu.matmul %48, %49, %cst_29 {dimension_numbers = #tpu.dot_dimension_numbers<[1], [0], [0], [1], [0, 0, 1, 1], [], []>} : vector<16x32xbf16>, vector<32x32xbf16>, vector<16x32xf32> -> vector<16x32xf32>
    %c0_30 = arith.constant 0 : index
    %c0_31 = arith.constant 0 : index
    %51 = vector.load %arg12[%c0_30, %c0_31] : memref<1x32xf32, #tpu.memory_space<vmem>>, vector<1x32xf32>
    %52 = vector.broadcast %51 : vector<1x32xf32> to vector<16x32xf32>
    %53 = arith.addf %50, %52 : vector<16x32xf32>
    %cst_32 = arith.constant 0.000000e+00 : f32
    %54 = vector.broadcast %cst_32 : f32 to vector<16x32xf32>
    %55 = arith.maximumf %53, %54 : vector<16x32xf32>
    %56 = arith.truncf %55 : vector<16x32xf32> to vector<16x32xbf16>
    %c0_33 = arith.constant 0 : index
    %c0_34 = arith.constant 0 : index
    %57 = vector.load %arg13[%c0_33, %c0_34] : memref<32x128xbf16, #tpu.memory_space<vmem>>, vector<32x128xbf16>
    %cst_35 = arith.constant dense<0.000000e+00> : vector<16x128xf32>
    %58 = tpu.matmul %56, %57, %cst_35 {dimension_numbers = #tpu.dot_dimension_numbers<[1], [0], [0], [1], [0, 0, 1, 1], [], []>} : vector<16x32xbf16>, vector<32x128xbf16>, vector<16x128xf32> -> vector<16x128xf32>
    %c0_36 = arith.constant 0 : index
    %c0_37 = arith.constant 0 : index
    %59 = vector.load %arg14[%c0_36, %c0_37] : memref<1x128xf32, #tpu.memory_space<vmem>>, vector<1x128xf32>
    %60 = vector.broadcast %59 : vector<1x128xf32> to vector<16x128xf32>
    %61 = arith.addf %58, %60 : vector<16x128xf32>
    %62 = arith.mulf %61, %61 : vector<16x128xf32>
    %cst_38 = arith.constant dense<0.000000e+00> : vector<16xf32>
    %63 = vector.multi_reduction <add>, %62, %cst_38 [1] : vector<16x128xf32> to vector<16xf32>
    %64 = vector.shape_cast %63 : vector<16xf32> to vector<16x1xf32>
    %cst_39 = arith.constant 1.000000e-16 : f32
    %65 = vector.broadcast %cst_39 : f32 to vector<16x1xf32>
    %66 = arith.addf %64, %65 : vector<16x1xf32>
    %67 = math.rsqrt %66 : vector<16x1xf32>
    %68 = vector.broadcast %67 : vector<16x1xf32> to vector<16x128xf32>
    %69 = arith.mulf %61, %68 : vector<16x128xf32>
    %c0_40 = arith.constant 0 : index
    %c0_41 = arith.constant 0 : index
    %70 = vector.load %arg15[%c0_40, %c0_41] : memref<16x128xf32, #tpu.memory_space<vmem>>, vector<16x128xf32>
    tpu.vector_store %arg15[%c0_40, %c0_41], %69 {strides = array<i32>} : memref<16x128xf32, #tpu.memory_space<vmem>>, vector<16x128xf32>,
    return
  }
  func.func @transform_0(%arg0: i32) -> (i32, i32) {
    %c0_i32 = arith.constant 0 : i32
    %c0_i32_0 = arith.constant 0 : i32
    return %arg0, %c0_i32 : i32, i32
  }
  func.func @transform_1(%arg0: i32) -> (i32, i32) {
    %c0_i32 = arith.constant 0 : i32
    %c0_i32_0 = arith.constant 0 : i32
    return %arg0, %c0_i32 : i32, i32
  }
  func.func @transform_2(%arg0: i32) -> (i32, i32) {
    %c0_i32 = arith.constant 0 : i32
    %c0_i32_0 = arith.constant 0 : i32
    return %arg0, %c0_i32 : i32, i32
  }
  func.func @transform_3(%arg0: i32) -> (i32, i32) {
    %c0_i32 = arith.constant 0 : i32
    %c0_i32_0 = arith.constant 0 : i32
    %c0_i32_1 = arith.constant 0 : i32
    return %c0_i32, %c0_i32_0 : i32, i32
  }
  func.func @transform_4(%arg0: i32) -> (i32, i32) {
    %c0_i32 = arith.constant 0 : i32
    %c0_i32_0 = arith.constant 0 : i32
    %c0_i32_1 = arith.constant 0 : i32
    return %c0_i32, %c0_i32_0 : i32, i32
  }
  func.func @transform_5(%arg0: i32) -> (i32, i32) {
    %c0_i32 = arith.constant 0 : i32
    %c0_i32_0 = arith.constant 0 : i32
    %c0_i32_1 = arith.constant 0 : i32
    return %c0_i32, %c0_i32_0 : i32, i32
  }
  func.func @transform_6(%arg0: i32) -> (i32, i32) {
    %c0_i32 = arith.constant 0 : i32
    %c0_i32_0 = arith.constant 0 : i32
    %c0_i32_1 = arith.constant 0 : i32
    return %c0_i32, %c0_i32_0 : i32, i32
  }
  func.func @transform_7(%arg0: i32) -> (i32, i32) {
    %c0_i32 = arith.constant 0 : i32
    %c0_i32_0 = arith.constant 0 : i32
    %c0_i32_1 = arith.constant 0 : i32
    return %c0_i32, %c0_i32_0 : i32, i32
  }
  func.func @transform_8(%arg0: i32) -> (i32, i32) {
    %c0_i32 = arith.constant 0 : i32
    %c0_i32_0 = arith.constant 0 : i32
    %c0_i32_1 = arith.constant 0 : i32
    return %c0_i32, %c0_i32_0 : i32, i32
  }
  func.func @transform_9(%arg0: i32) -> (i32, i32) {
    %c0_i32 = arith.constant 0 : i32
    %c0_i32_0 = arith.constant 0 : i32
    %c0_i32_1 = arith.constant 0 : i32
    return %c0_i32, %c0_i32_0 : i32, i32
  }
  func.func @transform_10(%arg0: i32) -> (i32, i32) {
    %c0_i32 = arith.constant 0 : i32
    %c0_i32_0 = arith.constant 0 : i32
    %c0_i32_1 = arith.constant 0 : i32
    return %c0_i32, %c0_i32_0 : i32, i32
  }
  func.func @transform_11(%arg0: i32) -> (i32, i32) {
    %c0_i32 = arith.constant 0 : i32
    %c0_i32_0 = arith.constant 0 : i32
    %c0_i32_1 = arith.constant 0 : i32
    return %c0_i32, %c0_i32_0 : i32, i32
  }
  func.func @transform_12(%arg0: i32) -> (i32, i32) {
    %c0_i32 = arith.constant 0 : i32
    %c0_i32_0 = arith.constant 0 : i32
    %c0_i32_1 = arith.constant 0 : i32
    return %c0_i32, %c0_i32_0 : i32, i32
  }
  func.func @transform_13(%arg0: i32) -> (i32, i32) {
    %c0_i32 = arith.constant 0 : i32
    %c0_i32_0 = arith.constant 0 : i32
    %c0_i32_1 = arith.constant 0 : i32
    return %c0_i32, %c0_i32_0 : i32, i32
  }
  func.func @transform_14(%arg0: i32) -> (i32, i32) {
    %c0_i32 = arith.constant 0 : i32
    %c0_i32_0 = arith.constant 0 : i32
    return %arg0, %c0_i32 : i32, i32
  }
}

</mosaic_0001>

<llo_original>
// kernel: tpu_custom_call.1
$region0: #{tpu_custom_call.1}
  #allocation0 [shape = 'u32[]', space=smem, size = 0x4, offset = 0x4, fixed_abs, tag = 'smem constant byte address 0x4 - core index']
  #allocation1 [shape = 'u32[72,128]{1,0:T(1,128)}', space=vmem, size = 0x9000, scoped, tag = 'internal scratch']
  #allocation2 [shape = 'f32[1,1]{1,0:T(1,128)S(1)}', space=vmem, size = 0x200, scoped, tag = 'scoped memory for tpu_custom_call.1']
  %s0 = inlined_call_operand.vmem [shape: bf16[32,32], index: 0, kind: input, shape index: {}]
  %s1 = inlined_call_operand.vmem [shape: bf16[32,5], index: 1, kind: input, shape index: {}]
  %s2 = inlined_call_operand.vmem [shape: bf16[32,16], index: 2, kind: input, shape index: {}]
  %s3 = inlined_call_operand.vmem [shape: bf16[32,64], index: 3, kind: input, shape index: {}]
  %s4 = inlined_call_operand.hbm [shape: bf16[5,64], index: 4, kind: input, shape index: {}]
  %s5 = inlined_call_operand.hbm [shape: f32[1,64], index: 5, kind: input, shape index: {}]
  %s6 = inlined_call_operand.hbm [shape: f32[1,32], index: 6, kind: input, shape index: {}]
  %s7 = inlined_call_operand.<no memory space> [shape: f32[1,1], index: 7, kind: input, shape index: {}]
  %s8 = inlined_call_operand.hbm [shape: bf16[32,32], index: 8, kind: input, shape index: {}]
  %s9 = inlined_call_operand.hbm [shape: f32[1,32], index: 9, kind: input, shape index: {}]
  %s10 = inlined_call_operand.hbm [shape: bf16[32,32], index: 10, kind: input, shape index: {}]
  %s11 = inlined_call_operand.hbm [shape: f32[1,32], index: 11, kind: input, shape index: {}]
  %s12 = inlined_call_operand.vmem [shape: bf16[32,128], index: 12, kind: input, shape index: {}]
  %s13 = inlined_call_operand.vmem [shape: f32[1,128], index: 13, kind: input, shape index: {}]
  %s14 = inlined_call_operand.hbm [shape: f32[32,128], index: 14, kind: output, shape index: {}]
  %s15 = sld [smem:[#allocation0]]
  $region117: #{tpu_custom_call.1} parent=0
    _
  %s17 = ssub.s32 1, %s15
  %s18 = scalar_select 0, %s17, %s15
  %v19 = vstv %s7
  %20 = vst [vmem:[#allocation2] sm:$0x1] %v19
  $region1: #{tpu_custom_call.1} parent=0
    #allocation3 [shape = 'u8[2048]{0}', space=vmem, size = 0x800, scoped, tag = 'input window, operand 4, single buffered']
    #allocation4 [shape = 's32[2]{0}', space=sflag, size = 0x8, scoped, tag = 'scoped memory for tpu_custom_call.1']
    #allocation5 [shape = 's32[2]{0}', space=sflag, size = 0x8, scoped, tag = 'scoped memory for tpu_custom_call.1']
    #allocation6 [shape = 'u8[512]{0}', space=vmem, size = 0x400, scoped, tag = 'input window, operand 5, single buffered']
    #allocation7 [shape = 's32[1]{0}', space=sflag, size = 0x4, scoped, tag = 'scoped memory for tpu_custom_call.1']
    #allocation8 [shape = 'u8[512]{0}', space=vmem, size = 0x400, scoped, tag = 'input window, operand 6, single buffered']
    #allocation9 [shape = 'u8[8192]{0}', space=vmem, size = 0x2000, scoped, tag = 'input window, operand 8, single buffered']
    #allocation10 [shape = 's32[1]{0}', space=sflag, size = 0x4, scoped, tag = 'scoped memory for tpu_custom_call.1']
    #allocation11 [shape = 'u8[512]{0}', space=vmem, size = 0x400, scoped, tag = 'input window, operand 9, single buffered']
    #allocation12 [shape = 'u8[8192]{0}', space=vmem, size = 0x2000, scoped, tag = 'input window, operand 10, single buffered']
    #allocation13 [shape = 's32[1]{0}', space=sflag, size = 0x4, scoped, tag = 'scoped memory for tpu_custom_call.1']
    #allocation14 [shape = 'u8[512]{0}', space=vmem, size = 0x400, scoped, tag = 'input window, operand 11, single buffered']
    #allocation15 [shape = 'u8[16384]{0}', space=vmem, size = 0x4000, scoped, tag = 'output window, operand 0']
    %21 = vsyncpa [#allocation4], 0
    %22 = vsyncpa [#allocation7], 0
    %23 = vsyncpa [#allocation10], 0
    %24 = vsyncpa [#allocation13], 0
    %25 = vsyncpa [#allocation5], 0
    %s26 = scalar_lea.sflag [#allocation5], 1
    %27 = vsyncpa %s26, 0
    loop: start=0, step=1, limit=4
    $region2: #{tpu_custom_call.1} parent=1 // loop_pre_header
      _
    $region3: #{tpu_custom_call.1} parent=1 // loop_header
      %s29 = sphi 0, %s33
      %p30 = scmp.ge.s32.totalorder %s29, 4
      %s39 = sphi 0, %s41
      %s42 = sphi 0, %s39
      %s43 = sphi 0, %s42
      %s59 = sphi 0, %s43
      %s65 = sphi 0, %s67
      %s68 = sphi 0, %s65
      %s69 = sphi 0, %s68
      %s85 = sphi 0, %s69
      %s91 = sphi 0, %s93
      %s94 = sphi 0, %s91
      %s95 = sphi 0, %s94
      %s111 = sphi 0, %s95
      %s115 = sphi 0, %s115
      %s117 = sphi 0, %s115
      %s118 = sphi 0, %s117
      %s132 = sphi 0, %s118
      %s136 = sphi 0, %s136
      %s138 = sphi 0, %s136
      %s139 = sphi 0, %s138
      %s153 = sphi 0, %s139
      %s157 = sphi 0, %s157
      %s159 = sphi 0, %s157
      %s160 = sphi 0, %s159
      %s174 = sphi 0, %s160
      %s178 = sphi 0, %s178
      %s180 = sphi 0, %s178
      %s181 = sphi 0, %s180
      %s195 = sphi 0, %s181
      %s199 = sphi 0, %s199
      %s201 = sphi 0, %s199
      %s202 = sphi 0, %s201
      %s216 = sphi 0, %s202
      %s220 = sphi 0, %s220
      %s222 = sphi 0, %s220
      %s223 = sphi 0, %s222
      %s237 = sphi 0, %s223
      %s241 = sphi 0, %s241
      %s243 = sphi 0, %s241
      %s244 = sphi 0, %s243
      %s258 = sphi 0, %s244
      %s262 = sphi 0, %s262
      %s264 = sphi 0, %s262
      %s265 = sphi 0, %s264
      %s279 = sphi 0, %s265
      %s283 = sphi 0, %s283
      %s285 = sphi 0, %s283
      %s286 = sphi 0, %s285
      %s300 = sphi 0, %s286
      %s304 = sphi 0, %s304
      %s306 = sphi 0, %s304
      %s307 = sphi 0, %s306
      %s321 = sphi 0, %s307
      %s325 = sphi 0, %s325
      %s327 = sphi 0, %s325
      %s328 = sphi 0, %s327
      %s342 = sphi 0, %s328
      %s348 = sphi 0, %s350
      %s351 = sphi 0, %s348
      %s352 = sphi 0, %s351
      %s368 = sphi 0, %s352
    $region4: #{tpu_custom_call.1} parent=1 // loop_header_branch
      %32 = sbr.rel (%p30) target = $region8
    $region5: #{tpu_custom_call.1} parent=1 // loop_body
      %s34 = ssub.s32 %s29, 1
      %s35 = ssub.s32 %s29, 2
      %s36 = sadd.s32 %s29, 1
      %s37 = ssub.s32 %s29, %s36
      %p38 = scmp.eq.s32.totalorder %s37, 0
      %s40 = sadd.s32 %s39, 1
      %s41 = scalar_select %p38, %s39, %s40
      %p44 = pneg %p38
      %p45 = scmp.eq.s32.totalorder %s29, 1
      %p46 = por %p44, %p45
      %p47 = scmp.ne.s32.totalorder %s39, %s42
      %p48 = scmp.eq.s32.totalorder %s29, 0
      %p49 = por %p47, %p48
      %p50 = scmp.ne.s32.totalorder %s39, %s42
      %p51 = scmp.eq.s32.totalorder %s34, 1
      %p52 = por %p50, %p51
      %p53 = scmp.ne.s32.totalorder %s42, %s43
      %p54 = scmp.eq.s32.totalorder %s34, 0
      %p55 = por %p53, %p54
      %p56 = scmp.ne.s32.totalorder %s42, %s43
      %p57 = scmp.eq.s32.totalorder %s35, 1
      %p58 = por %p56, %p57
      %p60 = scmp.ne.s32.totalorder %s43, %s59
      %p61 = scmp.eq.s32.totalorder %s35, 0
      %p62 = por %p60, %p61
      %s63 = ssub.s32 %s29, %s36
      %p64 = scmp.eq.s32.totalorder %s63, 0
      %s66 = sadd.s32 %s65, 1
      %s67 = scalar_select %p64, %s65, %s66
      %p70 = pneg %p64
      %p71 = scmp.eq.s32.totalorder %s29, 1
      %p72 = por %p70, %p71
      %p73 = scmp.ne.s32.totalorder %s65, %s68
      %p74 = scmp.eq.s32.totalorder %s29, 0
      %p75 = por %p73, %p74
      %p76 = scmp.ne.s32.totalorder %s65, %s68
      %p77 = scmp.eq.s32.totalorder %s34, 1
      %p78 = por %p76, %p77
      %p79 = scmp.ne.s32.totalorder %s68, %s69
      %p80 = scmp.eq.s32.totalorder %s34, 0
      %p81 = por %p79, %p80
      %p82 = scmp.ne.s32.totalorder %s68, %s69
      %p83 = scmp.eq.s32.totalorder %s35, 1
      %p84 = por %p82, %p83
      %p86 = scmp.ne.s32.totalorder %s69, %s85
      %p87 = scmp.eq.s32.totalorder %s35, 0
      %p88 = por %p86, %p87
      %s89 = ssub.s32 %s29, %s36
      %p90 = scmp.eq.s32.totalorder %s89, 0
      %s92 = sadd.s32 %s91, 1
      %s93 = scalar_select %p90, %s91, %s92
      %p96 = pneg %p90
      %p97 = scmp.eq.s32.totalorder %s29, 1
      %p98 = por %p96, %p97
      %p99 = scmp.ne.s32.totalorder %s91, %s94
      %p100 = scmp.eq.s32.totalorder %s29, 0
      %p101 = por %p99, %p100
      %p102 = scmp.ne.s32.totalorder %s91, %s94
      %p103 = scmp.eq.s32.totalorder %s34, 1
      %p104 = por %p102, %p103
      %p105 = scmp.ne.s32.totalorder %s94, %s95
      %p106 = scmp.eq.s32.totalorder %s34, 0
      %p107 = por %p105, %p106
      %p108 = scmp.ne.s32.totalorder %s94, %s95
      %p109 = scmp.eq.s32.totalorder %s35, 1
      %p110 = por %p108, %p109
      %p112 = scmp.ne.s32.totalorder %s95, %s111
      %p113 = scmp.eq.s32.totalorder %s35, 0
      %p114 = por %p112, %p113
      %s116 = sadd.s32 %s115, 1
      %p119 = scmp.eq.s32.totalorder %s29, 1
      %p120 = scmp.ne.s32.totalorder %s115, %s117
      %p121 = scmp.eq.s32.totalorder %s29, 0
      %p122 = por %p120, %p121
      %p123 = scmp.ne.s32.totalorder %s115, %s117
      %p124 = scmp.eq.s32.totalorder %s34, 1
      %p125 = por %p123, %p124
      %p126 = scmp.ne.s32.totalorder %s117, %s118
      %p127 = scmp.eq.s32.totalorder %s34, 0
      %p128 = por %p126, %p127
      %p129 = scmp.ne.s32.totalorder %s117, %s118
      %p130 = scmp.eq.s32.totalorder %s35, 1
      %p131 = por %p129, %p130
      %p133 = scmp.ne.s32.totalorder %s118, %s132
      %p134 = scmp.eq.s32.totalorder %s35, 0
      %p135 = por %p133, %p134
      %s137 = sadd.s32 %s136, 1
      %p140 = scmp.eq.s32.totalorder %s29, 1
      %p141 = scmp.ne.s32.totalorder %s136, %s138
      %p142 = scmp.eq.s32.totalorder %s29, 0
      %p143 = por %p141, %p142
      %p144 = scmp.ne.s32.totalorder %s136, %s138
      %p145 = scmp.eq.s32.totalorder %s34, 1
      %p146 = por %p144, %p145
      %p147 = scmp.ne.s32.totalorder %s138, %s139
      %p148 = scmp.eq.s32.totalorder %s34, 0
      %p149 = por %p147, %p148
      %p150 = scmp.ne.s32.totalorder %s138, %s139
      %p151 = scmp.eq.s32.totalorder %s35, 1
      %p152 = por %p150, %p151
      %p154 = scmp.ne.s32.totalorder %s139, %s153
      %p155 = scmp.eq.s32.totalorder %s35, 0
      %p156 = por %p154, %p155
      %s158 = sadd.s32 %s157, 1
      %p161 = scmp.eq.s32.totalorder %s29, 1
      %p162 = scmp.ne.s32.totalorder %s157, %s159
      %p163 = scmp.eq.s32.totalorder %s29, 0
      %p164 = por %p162, %p163
      %p165 = scmp.ne.s32.totalorder %s157, %s159
      %p166 = scmp.eq.s32.totalorder %s34, 1
      %p167 = por %p165, %p166
      %p168 = scmp.ne.s32.totalorder %s159, %s160
      %p169 = scmp.eq.s32.totalorder %s34, 0
      %p170 = por %p168, %p169
      %p171 = scmp.ne.s32.totalorder %s159, %s160
      %p172 = scmp.eq.s32.totalorder %s35, 1
      %p173 = por %p171, %p172
      %p175 = scmp.ne.s32.totalorder %s160, %s174
      %p176 = scmp.eq.s32.totalorder %s35, 0
      %p177 = por %p175, %p176
      %s179 = sadd.s32 %s178, 1
      %p182 = scmp.eq.s32.totalorder %s29, 1
      %p183 = scmp.ne.s32.totalorder %s178, %s180
      %p184 = scmp.eq.s32.totalorder %s29, 0
      %p185 = por %p183, %p184
      %p186 = scmp.ne.s32.totalorder %s178, %s180
      %p187 = scmp.eq.s32.totalorder %s34, 1
      %p188 = por %p186, %p187
      %p189 = scmp.ne.s32.totalorder %s180, %s181
      %p190 = scmp.eq.s32.totalorder %s34, 0
      %p191 = por %p189, %p190
      %p192 = scmp.ne.s32.totalorder %s180, %s181
      %p193 = scmp.eq.s32.totalorder %s35, 1
      %p194 = por %p192, %p193
      %p196 = scmp.ne.s32.totalorder %s181, %s195
      %p197 = scmp.eq.s32.totalorder %s35, 0
      %p198 = por %p196, %p197
      %s200 = sadd.s32 %s199, 1
      %p203 = scmp.eq.s32.totalorder %s29, 1
      %p204 = scmp.ne.s32.totalorder %s199, %s201
      %p205 = scmp.eq.s32.totalorder %s29, 0
      %p206 = por %p204, %p205
      %p207 = scmp.ne.s32.totalorder %s199, %s201
      %p208 = scmp.eq.s32.totalorder %s34, 1
      %p209 = por %p207, %p208
      %p210 = scmp.ne.s32.totalorder %s201, %s202
      %p211 = scmp.eq.s32.totalorder %s34, 0
      %p212 = por %p210, %p211
      %p213 = scmp.ne.s32.totalorder %s201, %s202
      %p214 = scmp.eq.s32.totalorder %s35, 1
      %p215 = por %p213, %p214
      %p217 = scmp.ne.s32.totalorder %s202, %s216
      %p218 = scmp.eq.s32.totalorder %s35, 0
      %p219 = por %p217, %p218
      %s221 = sadd.s32 %s220, 1
      %p224 = scmp.eq.s32.totalorder %s29, 1
      %p225 = scmp.ne.s32.totalorder %s220, %s222
      %p226 = scmp.eq.s32.totalorder %s29, 0
      %p227 = por %p225, %p226
      %p228 = scmp.ne.s32.totalorder %s220, %s222
      %p229 = scmp.eq.s32.totalorder %s34, 1
      %p230 = por %p228, %p229
      %p231 = scmp.ne.s32.totalorder %s222, %s223
      %p232 = scmp.eq.s32.totalorder %s34, 0
      %p233 = por %p231, %p232
      %p234 = scmp.ne.s32.totalorder %s222, %s223
      %p235 = scmp.eq.s32.totalorder %s35, 1
      %p236 = por %p234, %p235
      %p238 = scmp.ne.s32.totalorder %s223, %s237
      %p239 = scmp.eq.s32.totalorder %s35, 0
      %p240 = por %p238, %p239
      %s242 = sadd.s32 %s241, 1
      %p245 = scmp.eq.s32.totalorder %s29, 1
      %p246 = scmp.ne.s32.totalorder %s241, %s243
      %p247 = scmp.eq.s32.totalorder %s29, 0
      %p248 = por %p246, %p247
      %p249 = scmp.ne.s32.totalorder %s241, %s243
      %p250 = scmp.eq.s32.totalorder %s34, 1
      %p251 = por %p249, %p250
      %p252 = scmp.ne.s32.totalorder %s243, %s244
      %p253 = scmp.eq.s32.totalorder %s34, 0
      %p254 = por %p252, %p253
      %p255 = scmp.ne.s32.totalorder %s243, %s244
      %p256 = scmp.eq.s32.totalorder %s35, 1
      %p257 = por %p255, %p256
      %p259 = scmp.ne.s32.totalorder %s244, %s258
      %p260 = scmp.eq.s32.totalorder %s35, 0
      %p261 = por %p259, %p260
      %s263 = sadd.s32 %s262, 1
      %p266 = scmp.eq.s32.totalorder %s29, 1
      %p267 = scmp.ne.s32.totalorder %s262, %s264
      %p268 = scmp.eq.s32.totalorder %s29, 0
      %p269 = por %p267, %p268
      %p270 = scmp.ne.s32.totalorder %s262, %s264
      %p271 = scmp.eq.s32.totalorder %s34, 1
      %p272 = por %p270, %p271
      %p273 = scmp.ne.s32.totalorder %s264, %s265
      %p274 = scmp.eq.s32.totalorder %s34, 0
      %p275 = por %p273, %p274
      %p276 = scmp.ne.s32.totalorder %s264, %s265
      %p277 = scmp.eq.s32.totalorder %s35, 1
      %p278 = por %p276, %p277
      %p280 = scmp.ne.s32.totalorder %s265, %s279
      %p281 = scmp.eq.s32.totalorder %s35, 0
      %p282 = por %p280, %p281
      %s284 = sadd.s32 %s283, 1
      %p287 = scmp.eq.s32.totalorder %s29, 1
      %p288 = scmp.ne.s32.totalorder %s283, %s285
      %p289 = scmp.eq.s32.totalorder %s29, 0
      %p290 = por %p288, %p289
      %p291 = scmp.ne.s32.totalorder %s283, %s285
      %p292 = scmp.eq.s32.totalorder %s34, 1
      %p293 = por %p291, %p292
      %p294 = scmp.ne.s32.totalorder %s285, %s286
      %p295 = scmp.eq.s32.totalorder %s34, 0
      %p296 = por %p294, %p295
      %p297 = scmp.ne.s32.totalorder %s285, %s286
      %p298 = scmp.eq.s32.totalorder %s35, 1
      %p299 = por %p297, %p298
      %p301 = scmp.ne.s32.totalorder %s286, %s300
      %p302 = scmp.eq.s32.totalorder %s35, 0
      %p303 = por %p301, %p302
      %s305 = sadd.s32 %s304, 1
      %p308 = scmp.eq.s32.totalorder %s29, 1
      %p309 = scmp.ne.s32.totalorder %s304, %s306
      %p310 = scmp.eq.s32.totalorder %s29, 0
      %p311 = por %p309, %p310
      %p312 = scmp.ne.s32.totalorder %s304, %s306
      %p313 = scmp.eq.s32.totalorder %s34, 1
      %p314 = por %p312, %p313
      %p315 = scmp.ne.s32.totalorder %s306, %s307
      %p316 = scmp.eq.s32.totalorder %s34, 0
      %p317 = por %p315, %p316
      %p318 = scmp.ne.s32.totalorder %s306, %s307
      %p319 = scmp.eq.s32.totalorder %s35, 1
      %p320 = por %p318, %p319
      %p322 = scmp.ne.s32.totalorder %s307, %s321
      %p323 = scmp.eq.s32.totalorder %s35, 0
      %p324 = por %p322, %p323
      %s326 = sadd.s32 %s325, 1
      %p329 = scmp.eq.s32.totalorder %s29, 1
      %p330 = scmp.ne.s32.totalorder %s325, %s327
      %p331 = scmp.eq.s32.totalorder %s29, 0
      %p332 = por %p330, %p331
      %p333 = scmp.ne.s32.totalorder %s325, %s327
      %p334 = scmp.eq.s32.totalorder %s34, 1
      %p335 = por %p333, %p334
      %p336 = scmp.ne.s32.totalorder %s327, %s328
      %p337 = scmp.eq.s32.totalorder %s34, 0
      %p338 = por %p336, %p337
      %p339 = scmp.ne.s32.totalorder %s327, %s328
      %p340 = scmp.eq.s32.totalorder %s35, 1
      %p341 = por %p339, %p340
      %p343 = scmp.ne.s32.totalorder %s328, %s342
      %p344 = scmp.eq.s32.totalorder %s35, 0
      %p345 = por %p343, %p344
      %s346 = ssub.s32 %s29, %s36
      %p347 = scmp.eq.s32.totalorder %s346, 0
      %s349 = sadd.s32 %s348, 1
      %s350 = scalar_select %p347, %s348, %s349
      %p353 = pneg %p347
      %p354 = scmp.eq.s32.totalorder %s29, 1
      %p355 = por %p353, %p354
      %p356 = scmp.ne.s32.totalorder %s348, %s351
      %p357 = scmp.eq.s32.totalorder %s29, 0
      %p358 = por %p356, %p357
      %p359 = scmp.ne.s32.totalorder %s348, %s351
      %p360 = scmp.eq.s32.totalorder %s34, 1
      %p361 = por %p359, %p360
      %p362 = scmp.ne.s32.totalorder %s351, %s352
      %p363 = scmp.eq.s32.totalorder %s34, 0
      %p364 = por %p362, %p363
      %p365 = scmp.ne.s32.totalorder %s351, %s352
      %p366 = scmp.eq.s32.totalorder %s35, 1
      %p367 = por %p365, %p366
      %p369 = scmp.ne.s32.totalorder %s352, %s368
      %p370 = scmp.eq.s32.totalorder %s35, 0
      %p371 = por %p369, %p370
      %p372 = scmp.le.s32.totalorder 1, %s29
      %p373 = scmp.lt.s32.totalorder %s29, 3
      %p374 = pnand %p372, %p373
      %p375 = pneg %p374
      // Predicated region
      $region9: #{tpu_custom_call.1} parent=5 // pred_check
        _
      $region10: #{tpu_custom_call.1} parent=5 // pred_check_branch
        %377 = sbr.rel (%p374) target = $region12
      $region11: #{tpu_custom_call.1} parent=5 // pred_region
        %s378 = ssub.s32 %s29, 1
        // Predicated region
        $region13: #{tpu_custom_call.1} parent=11 // pred_check
          %p379 = pneg %p128
        $region14: #{tpu_custom_call.1} parent=11 // pred_check_branch
          %381 = sbr.rel (%p379) target = $region16
        $region15: #{tpu_custom_call.1} parent=11 // pred_region
          _
        $region16: #{tpu_custom_call.1} parent=11 // pred_fallthru
          _
        // Predicated region
        $region17: #{tpu_custom_call.1} parent=11 // pred_check
          %p382 = pneg %p149
        $region18: #{tpu_custom_call.1} parent=11 // pred_check_branch
          %384 = sbr.rel (%p382) target = $region20
        $region19: #{tpu_custom_call.1} parent=11 // pred_region
          %386 = vsyncadd [#allocation4], 0
          %s388 = sshll.u32 %s4, 4
          %s389 = int_to_ptr.hbm [resolvable:$true] %s388
          %s390 = sshll.u32 [#allocation3], 4
          %s391 = int_to_ptr.vmem [resolvable:$true] %s390
          %393 = dma.hbm_to_vmem [thread:$0]  %s389, 64, %s391, [#allocation4]
        $region20: #{tpu_custom_call.1} parent=11 // pred_fallthru
          _
        // Predicated region
        $region21: #{tpu_custom_call.1} parent=11 // pred_check
          %p394 = pneg %p170
        $region22: #{tpu_custom_call.1} parent=11 // pred_check_branch
          %396 = sbr.rel (%p394) target = $region24
        $region23: #{tpu_custom_call.1} parent=11 // pred_region
          %398 = vsyncadd [#allocation7], 0
          %s400 = sshll.u32 %s5, 4
          %s401 = int_to_ptr.hbm [resolvable:$true] %s400
          %s402 = sshll.u32 [#allocation6], 4
          %s403 = int_to_ptr.vmem [resolvable:$true] %s402
          %405 = dma.hbm_to_vmem [thread:$0]  %s401, 16, %s403, [#allocation7]
        $region24: #{tpu_custom_call.1} parent=11 // pred_fallthru
          _
        // Predicated region
        $region25: #{tpu_custom_call.1} parent=11 // pred_check
          %p406 = pneg %p191
        $region26: #{tpu_custom_call.1} parent=11 // pred_check_branch
          %408 = sbr.rel (%p406) target = $region28
        $region27: #{tpu_custom_call.1} parent=11 // pred_region
          %410 = vsyncadd [#allocation7], 0
          %s412 = sshll.u32 %s6, 4
          %s413 = int_to_ptr.hbm [resolvable:$true] %s412
          %s414 = sshll.u32 [#allocation8], 4
          %s415 = int_to_ptr.vmem [resolvable:$true] %s414
          %417 = dma.hbm_to_vmem [thread:$0]  %s413, 16, %s415, [#allocation7]
        $region28: #{tpu_custom_call.1} parent=11 // pred_fallthru
          _
        // Predicated region
        $region29: #{tpu_custom_call.1} parent=11 // pred_check
          %p418 = pneg %p212
        $region30: #{tpu_custom_call.1} parent=11 // pred_check_branch
          %420 = sbr.rel (%p418) target = $region32
        $region31: #{tpu_custom_call.1} parent=11 // pred_region
          _
        $region32: #{tpu_custom_call.1} parent=11 // pred_fallthru
          _
        // Predicated region
        $region33: #{tpu_custom_call.1} parent=11 // pred_check
          %p421 = pneg %p233
        $region34: #{tpu_custom_call.1} parent=11 // pred_check_branch
          %423 = sbr.rel (%p421) target = $region36
        $region35: #{tpu_custom_call.1} parent=11 // pred_region
          %425 = vsyncadd [#allocation10], 0
          %s426 = sshll.u32 %s8, 4
          %s427 = int_to_ptr.hbm [resolvable:$true] %s426
          %s428 = sshll.u32 [#allocation9], 4
          %s429 = int_to_ptr.vmem [resolvable:$true] %s428
          %434 = dma.hbm_to_vmem [thread:$0]  %s427, 256, %s429, [#allocation10], 64, 64, 4
        $region36: #{tpu_custom_call.1} parent=11 // pred_fallthru
          _
        // Predicated region
        $region37: #{tpu_custom_call.1} parent=11 // pred_check
          %p435 = pneg %p254
        $region38: #{tpu_custom_call.1} parent=11 // pred_check_branch
          %437 = sbr.rel (%p435) target = $region40
        $region39: #{tpu_custom_call.1} parent=11 // pred_region
          %439 = vsyncadd [#allocation10], 0
          %s441 = sshll.u32 %s9, 4
          %s442 = int_to_ptr.hbm [resolvable:$true] %s441
          %s443 = sshll.u32 [#allocation11], 4
          %s444 = int_to_ptr.vmem [resolvable:$true] %s443
          %446 = dma.hbm_to_vmem [thread:$0]  %s442, 16, %s444, [#allocation10]
        $region40: #{tpu_custom_call.1} parent=11 // pred_fallthru
          _
        // Predicated region
        $region41: #{tpu_custom_call.1} parent=11 // pred_check
          %p447 = pneg %p275
        $region42: #{tpu_custom_call.1} parent=11 // pred_check_branch
          %449 = sbr.rel (%p447) target = $region44
        $region43: #{tpu_custom_call.1} parent=11 // pred_region
          %451 = vsyncadd [#allocation13], 0
          %s452 = sshll.u32 %s10, 4
          %s453 = int_to_ptr.hbm [resolvable:$true] %s452
          %s454 = sshll.u32 [#allocation12], 4
          %s455 = int_to_ptr.vmem [resolvable:$true] %s454
          %460 = dma.hbm_to_vmem [thread:$0]  %s453, 256, %s455, [#allocation13], 64, 64, 4
        $region44: #{tpu_custom_call.1} parent=11 // pred_fallthru
          _
        // Predicated region
        $region45: #{tpu_custom_call.1} parent=11 // pred_check
          %p461 = pneg %p296
        $region46: #{tpu_custom_call.1} parent=11 // pred_check_branch
          %463 = sbr.rel (%p461) target = $region48
        $region47: #{tpu_custom_call.1} parent=11 // pred_region
          %465 = vsyncadd [#allocation13], 0
          %s467 = sshll.u32 %s11, 4
          %s468 = int_to_ptr.hbm [resolvable:$true] %s467
          %s469 = sshll.u32 [#allocation14], 4
          %s470 = int_to_ptr.vmem [resolvable:$true] %s469
          %472 = dma.hbm_to_vmem [thread:$0]  %s468, 16, %s470, [#allocation13]
        $region48: #{tpu_custom_call.1} parent=11 // pred_fallthru
          _
        // Predicated region
        $region49: #{tpu_custom_call.1} parent=11 // pred_check
          %p473 = pneg %p317
        $region50: #{tpu_custom_call.1} parent=11 // pred_check_branch
          %475 = sbr.rel (%p473) target = $region52
        $region51: #{tpu_custom_call.1} parent=11 // pred_region
          _
        $region52: #{tpu_custom_call.1} parent=11 // pred_fallthru
          _
        // Predicated region
        $region53: #{tpu_custom_call.1} parent=11 // pred_check
          %p476 = pneg %p338
        $region54: #{tpu_custom_call.1} parent=11 // pred_check_branch
          %478 = sbr.rel (%p476) target = $region56
        $region55: #{tpu_custom_call.1} parent=11 // pred_region
          _
        $region56: #{tpu_custom_call.1} parent=11 // pred_fallthru
          _
      $region12: #{tpu_custom_call.1} parent=5 // pred_fallthru
        _
      %p479 = scmp.lt.s32.totalorder %s29, 2
      // Predicated region
      $region57: #{tpu_custom_call.1} parent=5 // pred_check
        %p480 = pneg %p479
      $region58: #{tpu_custom_call.1} parent=5 // pred_check_branch
        %482 = sbr.rel (%p480) target = $region60
      $region59: #{tpu_custom_call.1} parent=5 // pred_region
        // Predicated region
        $region61: #{tpu_custom_call.1} parent=59 // pred_check
          %p483 = pneg %p49
        $region62: #{tpu_custom_call.1} parent=59 // pred_check_branch
          %485 = sbr.rel (%p483) target = $region64
        $region63: #{tpu_custom_call.1} parent=59 // pred_region
          %s486 = smul.u32 2, %s29
          %p487 = scmp.lt.s32.totalorder %s486, 3
          %s488 = scalar_select %p487, %s486, 3
          %s489 = smul.addr %s488, 4
          %s490 = scalar_lea.vmem %s0, %s489
          %s491 = smul.u32 2, %s29
        $region64: #{tpu_custom_call.1} parent=59 // pred_fallthru
          _
        // Predicated region
        $region65: #{tpu_custom_call.1} parent=59 // pred_check
          %p492 = pneg %p75
        $region66: #{tpu_custom_call.1} parent=59 // pred_check_branch
          %494 = sbr.rel (%p492) target = $region68
        $region67: #{tpu_custom_call.1} parent=59 // pred_region
          %s495 = smul.u32 2, %s29
          %p496 = scmp.lt.s32.totalorder %s495, 3
          %s497 = scalar_select %p496, %s495, 3
          %s498 = smul.addr %s497, 4
          %s499 = scalar_lea.vmem %s1, %s498
          %s500 = smul.u32 2, %s29
        $region68: #{tpu_custom_call.1} parent=59 // pred_fallthru
          _
        // Predicated region
        $region69: #{tpu_custom_call.1} parent=59 // pred_check
          %p501 = pneg %p101
        $region70: #{tpu_custom_call.1} parent=59 // pred_check_branch
          %503 = sbr.rel (%p501) target = $region72
        $region71: #{tpu_custom_call.1} parent=59 // pred_region
          %s504 = smul.u32 2, %s29
          %p505 = scmp.lt.s32.totalorder %s504, 3
          %s506 = scalar_select %p505, %s504, 3
          %s507 = smul.addr %s506, 4
          %s508 = scalar_lea.vmem %s2, %s507
          %s509 = smul.u32 2, %s29
        $region72: #{tpu_custom_call.1} parent=59 // pred_fallthru
          _
      $region60: #{tpu_custom_call.1} parent=5 // pred_fallthru
        _
      %p510 = scmp.le.s32.totalorder 1, %s29
      %p511 = scmp.lt.s32.totalorder %s29, 3
      %p512 = pnand %p510, %p511
      %p513 = pneg %p512
      // Predicated region
      $region73: #{tpu_custom_call.1} parent=5 // pred_check
        _
      $region74: #{tpu_custom_call.1} parent=5 // pred_check_branch
        %515 = sbr.rel (%p512) target = $region76
      $region75: #{tpu_custom_call.1} parent=5 // pred_region
        %s516 = ssub.s32 %s29, 1
        // Predicated region
        $region77: #{tpu_custom_call.1} parent=75 // pred_check
          %p517 = pneg %p149
        $region78: #{tpu_custom_call.1} parent=75 // pred_check_branch
          %519 = sbr.rel (%p517) target = $region80
        $region79: #{tpu_custom_call.1} parent=75 // pred_region
          %521 = dma.done [#allocation4], 64
        $region80: #{tpu_custom_call.1} parent=75 // pred_fallthru
          _
        // Predicated region
        $region81: #{tpu_custom_call.1} parent=75 // pred_check
          %p522 = pneg %p170
        $region82: #{tpu_custom_call.1} parent=75 // pred_check_branch
          %524 = sbr.rel (%p522) target = $region84
        $region83: #{tpu_custom_call.1} parent=75 // pred_region
          %526 = dma.done [#allocation7], 16
        $region84: #{tpu_custom_call.1} parent=75 // pred_fallthru
          _
        // Predicated region
        $region85: #{tpu_custom_call.1} parent=75 // pred_check
          %p527 = pneg %p191
        $region86: #{tpu_custom_call.1} parent=75 // pred_check_branch
          %529 = sbr.rel (%p527) target = $region88
        $region87: #{tpu_custom_call.1} parent=75 // pred_region
          %531 = dma.done [#allocation7], 16
        $region88: #{tpu_custom_call.1} parent=75 // pred_fallthru
          _
        // Predicated region
        $region89: #{tpu_custom_call.1} parent=75 // pred_check
          %p532 = pneg %p233
        $region90: #{tpu_custom_call.1} parent=75 // pred_check_branch
          %534 = sbr.rel (%p532) target = $region92
        $region91: #{tpu_custom_call.1} parent=75 // pred_region
          %536 = dma.done [#allocation10], 256
        $region92: #{tpu_custom_call.1} parent=75 // pred_fallthru
          _
        // Predicated region
        $region93: #{tpu_custom_call.1} parent=75 // pred_check
          %p537 = pneg %p254
        $region94: #{tpu_custom_call.1} parent=75 // pred_check_branch
          %539 = sbr.rel (%p537) target = $region96
        $region95: #{tpu_custom_call.1} parent=75 // pred_region
          %541 = dma.done [#allocation10], 16
        $region96: #{tpu_custom_call.1} parent=75 // pred_fallthru
          _
        // Predicated region
        $region97: #{tpu_custom_call.1} parent=75 // pred_check
          %p542 = pneg %p275
        $region98: #{tpu_custom_call.1} parent=75 // pred_check_branch
          %544 = sbr.rel (%p542) target = $region100
        $region99: #{tpu_custom_call.1} parent=75 // pred_region
          %546 = dma.done [#allocation13], 256
        $region100: #{tpu_custom_call.1} parent=75 // pred_fallthru
          _
        // Predicated region
        $region101: #{tpu_custom_call.1} parent=75 // pred_check
          %p547 = pneg %p296
        $region102: #{tpu_custom_call.1} parent=75 // pred_check_branch
          %549 = sbr.rel (%p547) target = $region104
        $region103: #{tpu_custom_call.1} parent=75 // pred_region
          %551 = dma.done [#allocation13], 16
        $region104: #{tpu_custom_call.1} parent=75 // pred_fallthru
          _
        %s552 = smul.u32 2, %s34
        %p553 = scmp.lt.s32.totalorder %s552, 3
        %s554 = scalar_select %p553, %s552, 3
        %s555 = smul.addr %s554, 4
        %s556 = scalar_lea.vmem %s0, %s555
        %p557 = pneg %p55
        %p558 = pneg %p52
        %s559 = smul.u32 2, %s34
        %p560 = scmp.lt.s32.totalorder %s559, 3
        %s561 = scalar_select %p560, %s559, 3
        %s562 = smul.addr %s561, 4
        %s563 = scalar_lea.vmem %s1, %s562
        %p564 = pneg %p81
        %p565 = pneg %p78
        %s566 = smul.u32 2, %s34
        %p567 = scmp.lt.s32.totalorder %s566, 3
        %s568 = scalar_select %p567, %s566, 3
        %s569 = smul.addr %s568, 4
        %s570 = scalar_lea.vmem %s2, %s569
        %p571 = pneg %p107
        %p572 = pneg %p104
        %p573 = pneg %p128
        %p574 = pneg %p125
        %p575 = pneg %p149
        %p576 = pneg %p146
        %p577 = pneg %p170
        %p578 = pneg %p167
        %p579 = pneg %p191
        %p580 = pneg %p188
        %p581 = pneg %p212
        %p582 = pneg %p209
        %p583 = pneg %p233
        %p584 = pneg %p230
        %p585 = pneg %p254
        %p586 = pneg %p251
        %p587 = pneg %p275
        %p588 = pneg %p272
        %p589 = pneg %p296
        %p590 = pneg %p293
        %p591 = pneg %p317
        %p592 = pneg %p314
        %p593 = pneg %p338
        %p594 = pneg %p335
        %p595 = pneg %p364
        %p596 = pneg %p361
        %s597 = sand.u32 %s351, 1
        %s598 = scalar_lea.sflag [#allocation5], %s597
        %s599 = sand.u32 %s351, 1
        %s600 = smul.addr %s599, 16
        %s601 = scalar_lea.vmem [#allocation15], %s600
        %s602 = smul.u32 2, %s34
        %p603 = scmp.lt.s32.totalorder %s602, 3
        %s604 = scalar_select %p603, %s602, 3
        %s605 = smul.addr %s604, 4
        %s606 = scalar_lea.vmem %s0, %s605
        %s607 = smul.u32 2, %s34
        %s608 = smul.u32 2, %s34
        %p609 = scmp.lt.s32.totalorder %s608, 3
        %s610 = scalar_select %p609, %s608, 3
        %s611 = smul.addr %s610, 4
        %s612 = scalar_lea.vmem %s1, %s611
        %s613 = smul.u32 2, %s34
        %s614 = smul.u32 2, %s34
        %p615 = scmp.lt.s32.totalorder %s614, 3
        %s616 = scalar_select %p615, %s614, 3
        %s617 = smul.addr %s616, 4
        %s618 = scalar_lea.vmem %s2, %s617
        %s619 = smul.u32 2, %s34
        %s620 = smul.u32 2, %s34
        %v622 = vld [vmem:[%s606] sm:$0xf]
        %v623 = vld [vmem:[%s606 + $0x4] sm:$0xf]
        %v624 = vld [vmem:[%s612] sm:$0xf]
        %v625 = vld [vmem:[%s612 + $0x4] sm:$0xf]
        %v626 = vld [vmem:[%s618] sm:$0xf]
        %v627 = vld [vmem:[%s618 + $0x4] sm:$0xf]
        %v628 = vld [vmem:[%s3] sm:$0xf]
        %v629 = vld [vmem:[%s3 + $0x4] sm:$0xf]
        %v630 = vld [vmem:[%s3 + $0x8] sm:$0xf]
        %v631 = vld [vmem:[%s3 + $0xc] sm:$0xf]
        %v632 = vld [vmem:[#allocation3] sm:$0x7]
        %v635 = vunpack.c.l.b16 %v624
        %v636 = vunpack.c.l.b16 %v625
        %v637 = vpack.c.b16 %v636, %v635
        %vm638 = vcmask 39936
        %v640 = vsel %vm638, %v637, 0
        %vm642 = vcmask 1041408
        %vm643 = vcmask 1042432
        %v644 = vsel %vm642, 4294967295, 65535
        %v645 = vsel %vm643, %v644, 0
        %v647 = vand.u32 %v632, %v645
        %649 = vmatpush.bf16.msra.mxu0 0
        %650 = vmatpush.bf16.msra.mxu0 0
        %651 = vmatpush.bf16.msra.mxu0 0
        %652 = vmatpush.bf16.msra.mxu0 0
        %653 = vmatpush.bf16.msra.mxu0 0
        %654 = vmatpush.bf16.msra.mxu0 0
        %655 = vmatpush.bf16.msra.mxu0 0
        %656 = vmatpush.bf16.msra.mxu0 %v647
        %657 = vmatmul.bf16.gmra.mxu0 %v640
        %v658 = vpop.f32.mrf.mxu0
        %v659 = vadd.f32 0.0, %v658
        %v660 = vpop.f32.mrf.mxu0
        %v661 = vadd.f32 0.0, %v660
        %662 = vdwg.mxu0
        %v665 = vunpack.c.l.b16 %v622
        %v666 = vunpack.c.l.b16 %v623
        %v667 = vpack.c.b16 %v666, %v665
        %v672 = vunpack.c.l.b16 %v628
        %v673 = vunpack.c.l.b16 %v629
        %v674 = vunpack.c.l.b16 %v630
        %v675 = vunpack.c.l.b16 %v631
        %v676 = vpack.c.b16 %v673, %v672
        %v677 = vpack.c.b16 %v675, %v674
        %vm680 = vcmask 261120
        %v682 = vsel %vm680, %v667, 0
        %684 = vmatpush.bf16.msra.mxu0 0
        %685 = vmatpush.bf16.msra.mxu0 0
        %686 = vmatpush.bf16.msra.mxu0 0
        %687 = vmatpush.bf16.msra.mxu0 0
        %688 = vmatpush.bf16.msra.mxu0 0
        %689 = vmatpush.bf16.msra.mxu0 0
        %690 = vmatpush.bf16.msra.mxu0 %v677
        %691 = vmatpush.bf16.msra.mxu0 %v676
        %692 = vmatmul.bf16.gmra.mxu0 %v682
        %v693 = vpop.f32.mrf.mxu0
        %v694 = vadd.f32 %v659, %v693
        %v695 = vpop.f32.mrf.mxu0
        %v696 = vadd.f32 %v661, %v695
        %697 = vdwg.mxu0
        %v698 = vld [vmem:[#allocation6] sm:$0x1]
        %v700 = vperm.slane %v698, 0
        %v702 = vadd.f32 %v694, %v700
        %v703 = vadd.f32 %v696, %v700
        %v704 = vmax.f32 %v702, 0.0
        %v705 = vmax.f32 %v703, 0.0
        %v706 = vld [vmem:[#allocation8] sm:$0x1]
        %v708 = vperm.slane %v706, 0
        %v710 = vmul.f32 %v704, %v708
        %v711 = vmul.f32 %v705, %v708
        %v712 = vsel %vm680, %v710, 0.0
        %713 = vadd.xlane.f32.xlu0 %v712
        %v714 = vpop.xlane.xlu0 %713
        %v715 = vsel %vm680, %v711, 0.0
        %716 = vadd.xlane.f32.xlu0 %v715
        %v717 = vpop.xlane.xlu0 %716
        %v718 = vld [vmem:[#allocation2] sm:$0x1]
        %v720 = vperm.slane %v718, 0
        %v722 = vadd.f32 %v714, %v720
        %v723 = vadd.f32 %v717, %v720
        %v724 = vxor.u32 %v722, 2147483648
        %v725 = vxor.u32 %v723, 2147483648
        %v726 = vmul.f32 %v724, 1.442695
        %v727 = vpow.pop %v726
        %v728 = vmul.f32 %v725, 1.442695
        %v729 = vpow.pop %v728
        %v730 = vadd.f32 %v727, 1.0
        %v731 = vadd.f32 %v729, 1.0
        %v732 = vrcp.pop %v730
        %v733 = vmul.f32 %v730, %v732
        %v734 = vsub.f32 1.0, %v733
        %v735 = vmul.f32 %v732, %v734
        %v736 = vadd.f32 %v732, %v735
        %vm737 = vweird.f32 %v730
        %vm738 = vweird.f32 %v732
        %vm739 = vmor %vm737, %vm738
        %v740 = vsel %vm739, %v732, %v736
        %v741 = vand.u32 2147483647, %v730
        %vm742 = vcmp.eq.f32.partialorder %v741, 8.507059e+37
        %v743 = vand.u32 %v730, 2147483648
        %v744 = vor.u32 1.1754944e-38, %v743
        %v745 = vsel %vm742, %v744, %v740
        %v746 = vmul.f32 1.0, %v745
        %v747 = vrcp.pop %v731
        %v748 = vmul.f32 %v731, %v747
        %v749 = vsub.f32 1.0, %v748
        %v750 = vmul.f32 %v747, %v749
        %v751 = vadd.f32 %v747, %v750
        %vm752 = vweird.f32 %v731
        %vm753 = vweird.f32 %v747
        %vm754 = vmor %vm752, %vm753
        %v755 = vsel %vm754, %v747, %v751
        %v756 = vand.u32 2147483647, %v731
        %vm757 = vcmp.eq.f32.partialorder %v756, 8.507059e+37
        %v758 = vand.u32 %v731, 2147483648
        %v759 = vor.u32 1.1754944e-38, %v758
        %v760 = vsel %vm757, %v759, %v755
        %v761 = vmul.f32 1.0, %v760
        %v762 = vpack.c.bf16 %v705, %v704
        %v763 = vld [vmem:[#allocation9] sm:$0xf]
        %v764 = vld [vmem:[#allocation9 + $0x4] sm:$0xf]
        %v765 = vld [vmem:[#allocation9 + $0x8] sm:$0xf]
        %v766 = vld [vmem:[#allocation9 + $0xc] sm:$0xf]
        %v767 = vld [vmem:[#allocation11] sm:$0x1]
        %v769 = vperm.slane %v767, 0
        %772 = vrot.lane.b32.xlu0 %v762, 96
        %v773 = vpop.permute.xlu0 %772
        %v778 = vunpack.c.l.b16 %v763
        %v779 = vunpack.c.l.b16 %v764
        %v780 = vunpack.c.l.b16 %v765
        %v781 = vunpack.c.l.b16 %v766
        %v782 = vpack.c.b16 %v779, %v778
        %v783 = vpack.c.b16 %v781, %v780
        %v787 = vsel %vm680, %v773, 0
        %789 = vmatpush.bf16.msra.mxu0 0
        %790 = vmatpush.bf16.msra.mxu0 0
        %791 = vmatpush.bf16.msra.mxu0 0
        %792 = vmatpush.bf16.msra.mxu0 0
        %793 = vmatpush.bf16.msra.mxu0 0
        %794 = vmatpush.bf16.msra.mxu0 0
        %795 = vmatpush.bf16.msra.mxu0 %v783
        %796 = vmatpush.bf16.msra.mxu0 %v782
        %797 = vmatmul.bf16.gmra.mxu0 %v787
        %v798 = vpop.f32.mrf.mxu0
        %v799 = vadd.f32 %v769, %v798
        %v800 = vpop.f32.mrf.mxu0
        %v801 = vadd.f32 %v769, %v800
        %802 = vdwg.mxu0
        %804 = vset.pattern.permute.xlu0 0
        %805 = vperm.xlu0 %804, %v746
        %v806 = vpop.permute.xlu0 %805
        %809 = vset.pattern.permute.xlu0 0
        %810 = vperm.xlu0 %809, %v761
        %v811 = vpop.permute.xlu0 %810
        %v813 = vmul.f32 %v806, %v799
        %v814 = vmul.f32 %v811, %v801
        %v815 = vpack.c.bf16 %v814, %v813
        %v818 = vunpack.c.l.b16 %v626
        %v819 = vunpack.c.l.b16 %v627
        %v820 = vpack.c.b16 %v819, %v818
        %vm821 = vcmask 130048
        %v823 = vsel %vm821, %v820, 0
        %825 = vmatpush.bf16.msra.mxu0 0
        %826 = vmatpush.bf16.msra.mxu0 0
        %827 = vmatpush.bf16.msra.mxu0 0
        %828 = vmatpush.bf16.msra.mxu0 0
        %829 = vmatpush.bf16.msra.mxu0 0
        %830 = vmatpush.bf16.msra.mxu0 0
        %831 = vmatpush.bf16.msra.mxu0 0
        %832 = vmatpush.bf16.msra.mxu0 %v815
        %833 = vmatmul.bf16.gmra.mxu0 %v823
        %v834 = vpop.f32.mrf.mxu0
        %v835 = vadd.f32 0.0, %v834
        %v836 = vpop.f32.mrf.mxu0
        %v837 = vadd.f32 0.0, %v836
        %838 = vdwg.mxu0
        %v839 = vmul.f32 %v835, %v835
        %v840 = vmul.f32 %v837, %v837
        %v841 = vsel %vm680, %v839, 0.0
        %842 = vadd.xlane.f32.xlu0 %v841
        %v843 = vpop.xlane.xlu0 %842
        %v844 = vsel %vm680, %v840, 0.0
        %845 = vadd.xlane.f32.xlu0 %v844
        %v846 = vpop.xlane.xlu0 %845
        %v847 = vadd.f32 %v843, 1e-16
        %v848 = vadd.f32 %v846, 1e-16
        %v849 = vrsqrt.pop %v847
        %v850 = vmul.f32 %v849, %v847
        %v851 = vmul.f32 %v850, %v849
        %v852 = vmul.f32 0.5, %v851
        %v853 = vsub.f32 1.5, %v852
        %v854 = vmul.f32 %v849, %v853
        %vm855 = vweird.f32 %v847
        %vm856 = vweird.f32 %v849
        %vm857 = vmor %vm855, %vm856
        %v858 = vsel %vm857, %v849, %v854
        %v859 = vrsqrt.pop %v848
        %v860 = vmul.f32 %v859, %v848
        %v861 = vmul.f32 %v860, %v859
        %v862 = vmul.f32 0.5, %v861
        %v863 = vsub.f32 1.5, %v862
        %v864 = vmul.f32 %v859, %v863
        %vm865 = vweird.f32 %v848
        %vm866 = vweird.f32 %v859
        %vm867 = vmor %vm865, %vm866
        %v868 = vsel %vm867, %v859, %v864
        %v869 = vmul.f32 %v835, %v858
        %v870 = vmul.f32 %v837, %v868
        %v871 = vunpack.c.l.bf16 %v622
        %v872 = vunpack.c.l.bf16 %v623
        %v873 = vadd.f32 %v871, %v869
        %v874 = vadd.f32 %v872, %v870
        %v875 = vpack.c.bf16 %v874, %v873
        %v876 = vld [vmem:[#allocation12] sm:$0xf]
        %v877 = vld [vmem:[#allocation12 + $0x4] sm:$0xf]
        %v878 = vld [vmem:[#allocation12 + $0x8] sm:$0xf]
        %v879 = vld [vmem:[#allocation12 + $0xc] sm:$0xf]
        %v880 = vld [vmem:[#allocation14] sm:$0x1]
        %v882 = vperm.slane %v880, 0
        %v888 = vunpack.c.l.b16 %v876
        %v889 = vunpack.c.l.b16 %v877
        %v890 = vunpack.c.l.b16 %v878
        %v891 = vunpack.c.l.b16 %v879
        %v892 = vpack.c.b16 %v889, %v888
        %v893 = vpack.c.b16 %v891, %v890
        %v897 = vsel %vm680, %v875, 0
        %899 = vmatpush.bf16.msra.mxu0 0
        %900 = vmatpush.bf16.msra.mxu0 0
        %901 = vmatpush.bf16.msra.mxu0 0
        %902 = vmatpush.bf16.msra.mxu0 0
        %903 = vmatpush.bf16.msra.mxu0 0
        %904 = vmatpush.bf16.msra.mxu0 0
        %905 = vmatpush.bf16.msra.mxu0 %v893
        %906 = vmatpush.bf16.msra.mxu0 %v892
        %907 = vmatmul.bf16.gmra.mxu0 %v897
        %v908 = vpop.f32.mrf.mxu0
        %v909 = vadd.f32 %v882, %v908
        %v910 = vpop.f32.mrf.mxu0
        %v911 = vadd.f32 %v882, %v910
        %912 = vdwg.mxu0
        %v913 = vmax.f32 %v909, 0.0
        %v914 = vmax.f32 %v911, 0.0
        %v915 = vpack.c.bf16 %v914, %v913
        %v916 = vld [vmem:[%s12] sm:$0xf]
        %v917 = vld [vmem:[%s12 + $0x4] sm:$0xf]
        %v918 = vld [vmem:[%s12 + $0x8] sm:$0xf]
        %v919 = vld [vmem:[%s12 + $0xc] sm:$0xf]
        %v920 = vld [vmem:[%s13] sm:$0x1]
        %v922 = vperm.slane %v920, 0
        %v928 = vunpack.c.l.b16 %v916
        %v929 = vunpack.c.l.b16 %v917
        %v930 = vunpack.c.l.b16 %v918
        %v931 = vunpack.c.l.b16 %v919
        %v932 = vpack.c.b16 %v929, %v928
        %v933 = vpack.c.b16 %v931, %v930
        %v937 = vsel %vm680, %v915, 0
        %939 = vmatpush.bf16.msra.mxu0 0
        %940 = vmatpush.bf16.msra.mxu0 0
        %941 = vmatpush.bf16.msra.mxu0 0
        %942 = vmatpush.bf16.msra.mxu0 0
        %943 = vmatpush.bf16.msra.mxu0 0
        %944 = vmatpush.bf16.msra.mxu0 0
        %945 = vmatpush.bf16.msra.mxu0 %v933
        %946 = vmatpush.bf16.msra.mxu0 %v932
        %947 = vmatmul.bf16.gmra.mxu0 %v937
        %v948 = vpop.f32.mrf.mxu0
        %v949 = vadd.f32 %v922, %v948
        %v950 = vpop.f32.mrf.mxu0
        %v951 = vadd.f32 %v922, %v950
        %952 = vdwg.mxu0
        %v953 = vmul.f32 %v949, %v949
        %v954 = vmul.f32 %v951, %v951
        %955 = vadd.xlane.f32.xlu0 %v953
        %v956 = vpop.xlane.xlu0 %955
        %957 = vadd.xlane.f32.xlu0 %v954
        %v958 = vpop.xlane.xlu0 %957
        %v959 = vadd.f32 %v956, 1e-16
        %v960 = vadd.f32 %v958, 1e-16
        %v961 = vrsqrt.pop %v959
        %v962 = vmul.f32 %v961, %v959
        %v963 = vmul.f32 %v962, %v961
        %v964 = vmul.f32 0.5, %v963
        %v965 = vsub.f32 1.5, %v964
        %v966 = vmul.f32 %v961, %v965
        %vm967 = vweird.f32 %v959
        %vm968 = vweird.f32 %v961
        %vm969 = vmor %vm967, %vm968
        %v970 = vsel %vm969, %v961, %v966
        %v971 = vrsqrt.pop %v960
        %v972 = vmul.f32 %v971, %v960
        %v973 = vmul.f32 %v972, %v971
        %v974 = vmul.f32 0.5, %v973
        %v975 = vsub.f32 1.5, %v974
        %v976 = vmul.f32 %v971, %v975
        %vm977 = vweird.f32 %v960
        %vm978 = vweird.f32 %v971
        %vm979 = vmor %vm977, %vm978
        %v980 = vsel %vm979, %v971, %v976
        %v981 = vmul.f32 %v949, %v970
        %v982 = vmul.f32 %v951, %v980
        %983 = vst [vmem:[%s601] sm:$0xff] %v981
        %984 = vst [vmem:[%s601 + $0x8] sm:$0xff] %v982
        %s985 = sand.u32 %s351, 1
        %s986 = scalar_lea.sflag [#allocation5], %s985
        %s987 = sand.u32 %s351, 1
        %s988 = smul.addr %s987, 16
        %s989 = scalar_lea.vmem [#allocation15], %s988
        // Predicated region
        $region105: #{tpu_custom_call.1} parent=75 // pred_check
          %p990 = pneg %p361
        $region106: #{tpu_custom_call.1} parent=75 // pred_check_branch
          %992 = sbr.rel (%p990) target = $region108
        $region107: #{tpu_custom_call.1} parent=75 // pred_region
          %s993 = smul.u32 2, %s34
          %995 = vsyncadd %s986, 0
          %s996 = smul.addr %s993, 8
          %s997 = scalar_lea.hbm %s14, %s996
          %s998 = sshll.u32 %s989, 4
          %s999 = int_to_ptr.vmem [resolvable:$true] %s998
          %s1000 = sshll.u32 %s997, 4
          %s1001 = int_to_ptr.hbm [resolvable:$true] %s1000
          %1006 = dma.vmem_to_hbm [thread:$0]  %s999, 256, %s1001, %s986, 128, 128, 8
        $region108: #{tpu_custom_call.1} parent=75 // pred_fallthru
          _
      $region76: #{tpu_custom_call.1} parent=5 // pred_fallthru
        _
      %p1007 = scmp.le.s32.totalorder 2, %s29
      // Predicated region
      $region109: #{tpu_custom_call.1} parent=5 // pred_check
        %p1008 = pneg %p1007
      $region110: #{tpu_custom_call.1} parent=5 // pred_check_branch
        %1010 = sbr.rel (%p1008) target = $region112
      $region111: #{tpu_custom_call.1} parent=5 // pred_region
        %s1011 = ssub.s32 %s29, 2
        // Predicated region
        $region113: #{tpu_custom_call.1} parent=111 // pred_check
          %p1012 = pneg %p367
        $region114: #{tpu_custom_call.1} parent=111 // pred_check_branch
          %1014 = sbr.rel (%p1012) target = $region116
        $region115: #{tpu_custom_call.1} parent=111 // pred_region
          %s1015 = sand.u32 %s352, 1
          %s1016 = scalar_lea.sflag [#allocation5], %s1015
          %s1017 = sand.u32 %s352, 1
          %s1018 = smul.addr %s1017, 16
          %s1019 = scalar_lea.vmem [#allocation15], %s1018
          %1021 = dma.done %s1016, 256
        $region116: #{tpu_custom_call.1} parent=111 // pred_fallthru
          _
      $region112: #{tpu_custom_call.1} parent=5 // pred_fallthru
        _
    $region6: #{tpu_custom_call.1} parent=1 // loop_footer
      %s33 = sadd.s32 1, %s29
    $region7: #{tpu_custom_call.1} parent=1 // loop_footer_branch
      %28 = sbr.rel target = $region3
    $region8: #{tpu_custom_call.1} parent=1 // loop_exit
      _
    %1022 = vsyncpa [#allocation4], 1
    %s1023 = scalar_lea.sflag [#allocation4], 1
    %1024 = vsyncpa %s1023, 1
    %1025 = vsyncpa [#allocation7], 1
    %1026 = vsyncpa [#allocation10], 1
    %1027 = vsyncpa [#allocation13], 1
    %1028 = vsyncpa [#allocation5], 1
    %s1029 = scalar_lea.sflag [#allocation5], 1
    %1030 = vsyncpa %s1029, 1

</llo_original>
